<compile_context>
chip_gen: v5e
topology: v5e:2x2
jax: 0.10.0
libtpu: 0.0.40
codegen_flags: <defaults>
</compile_context>

<pallas_src>
import math

import jax
import jax.numpy as jnp
from jax.experimental import pallas as pl
from jax.experimental.pallas import tpu as pltpu


def _eca_kernel_size(channel: int, gamma: int = 2, b: int = 1) -> int:
    # t = int(abs(log2(channel) + b) / gamma); k = t if odd else t + 1
    t = int(abs(math.log(float(channel)) / math.log(2.0) + b) / gamma)
    k = t if (t % 2) else t + 1
    return k


def _make_eca_kernel(k: int):
    pad = (k - 1) // 2

    def kernel(w_ref, x_ref, o_ref):
        # w_ref: SMEM (k,) f32  -- Conv1d weight (1, 1, k) squeezed
        # x_ref / o_ref: VMEM block (Bt, C, HW)
        _, c, hw = x_ref.shape

        # AdaptiveAvgPool2d(1): mean over spatial positions, f32 accumulation.
        # x_ref is re-read for the multiply below so the full tile never has
        # to stay live in vregs across the whole body.
        pooled = jnp.sum(x_ref[...].astype(jnp.float32),
                         axis=2, keepdims=True) * (1.0 / hw)      # (Bt, C, 1)

        # Conv1d(1, 1, k, padding=(k-1)//2, bias=False) along the channel axis
        # (cross-correlation): conv[c] = sum_j w[j] * padded[c + j].
        if pad > 0:
            z = jnp.zeros((pooled.shape[0], pad, 1), dtype=pooled.dtype)
            padded = jnp.concatenate([z, pooled, z], axis=1)
        else:
            padded = pooled

        conv = jnp.zeros_like(pooled)
        for j in range(k):  # k is tiny (1, 3 or 5) and static
            conv = conv + w_ref[j] * padded[:, j:j + c, :]

        # Sigmoid gate (f32), broadcast over spatial, multiply in input dtype.
        y = jax.nn.sigmoid(conv)                                   # (Bt, C, 1)
        o_ref[...] = (x_ref[...] * y.astype(x_ref.dtype)).astype(o_ref.dtype)

    return kernel


def eca_layer(x: jax.Array, weight: jax.Array,
              *, target_block_bytes: int = 2 << 20) -> jax.Array:
    """ECALayer forward.  x: (B, C, H, W), weight: (k,) f32."""
    B, C, H, W = x.shape
    k = int(weight.shape[0])
    HW = H * W
    itemsize = x.dtype.itemsize

    # Keep the free (B, C, HW) reshape end-to-end (no wrapper transposes:
    # those cost full extra HBM passes on an HBM-bound op).
    x3 = x.reshape(B, C, HW)

    # Padded per-batch VMEM footprint (sublane pad to 8, lane pad to 128).
    padded_rows = ((C + 7) // 8) * 8
    padded_cols = ((HW + 127) // 128) * 128
    padded_per_batch = padded_rows * padded_cols * itemsize

    # Pack batch elements per grid step so blocks land around
    # target_block_bytes (1-4 MB sweet spot), but always leave >= 2 grid
    # steps (>= 4 when B >= 4) so the pipeline has work to overlap and both
    # v7x TensorCores get a share of the "parallel" batch axis.
    bt_cap = max(1, target_block_bytes // max(padded_per_batch, 1))
    Bt = min(B, bt_cap)
    if B >= 2:
        desired_steps = 4 if B >= 4 else 2
        Bt = min(Bt, max(1, B // desired_steps))
    Bt = max(1, Bt)
    nb = pl.cdiv(B, Bt)                      # ragged last block is masked
    padded_block_bytes = Bt * padded_per_batch

    # VMEM limit: enough for double-buffered in+out blocks plus slack, but
    # never above the chip's capacity minus headroom (v7x is only 64 MiB).
    try:
        vmem_cap = int(pltpu.get_tpu_info().vmem_capacity_bytes)
    except Exception:
        vmem_cap = 64 << 20                  # conservative (v7x per-TC)
    vmem_ceiling = max(16 << 20, vmem_cap - (16 << 20))
    vmem_limit = int(min(vmem_ceiling,
                         max(32 << 20, 4 * padded_block_bytes + (8 << 20))))

    kernel = _make_eca_kernel(k)

    out3 = pl.pallas_call(
        kernel,
        out_shape=jax.ShapeDtypeStruct((B, C, HW), x.dtype),
        grid=(nb,),
        in_specs=[
            pl.BlockSpec(memory_space=pltpu.MemorySpace.SMEM),   # conv weight
            pl.BlockSpec((Bt, C, HW), lambda b: (b, 0, 0)),      # packed batches
        ],
        out_specs=pl.BlockSpec((Bt, C, HW), lambda b: (b, 0, 0)),
        compiler_params=pltpu.CompilerParams(
            dimension_semantics=("parallel",),
            vmem_limit_bytes=vmem_limit,
        ),
    )(weight, x3)

    return out3.reshape(B, C, H, W)


def eca_layer_reference(x: jax.Array, weight: jax.Array) -> jax.Array:
    """Pure-JAX reference matching the PyTorch forward."""
    B, C, H, W = x.shape
    k = int(weight.shape[0])
    pad = (k - 1) // 2
    pooled = jnp.mean(x.astype(jnp.float32), axis=(2, 3))    # (B, C)
    padded = jnp.pad(pooled, ((0, 0), (pad, pad)))           # (B, C + 2*pad)
    conv = jnp.zeros_like(pooled)
    for j in range(k):
        conv = conv + weight[j] * padded[:, j:j + C]
    y = jax.nn.sigmoid(conv)                                 # (B, C)
    return (x.astype(jnp.float32) * y[:, :, None, None]).astype(x.dtype)


if __name__ == "__main__":
    key = jax.random.PRNGKey(0)

    def run_case(case_key, B, C, H, W):
        kx, kw = jax.random.split(case_key)
        x = jax.random.normal(kx, (B, C, H, W), dtype=jnp.float32)
        k = _eca_kernel_size(C)
        # Deterministic Conv1d weight (PyTorch-style uniform bound 1/sqrt(fan_in)).
        bound = 1.0 / math.sqrt(k)
        weight = jax.random.uniform(kw, (k,), dtype=jnp.float32,
                                    minval=-bound, maxval=bound)
        out = jax.block_until_ready(eca_layer(x, weight))
        ref = eca_layer_reference(x, weight)
        assert out.shape == (B, C, H, W)
        assert jnp.allclose(out, ref, atol=1e-5, rtol=1e-5)

    k1, k2, k3 = jax.random.split(key, 3)
    # Early-stage-like shape: HW = 256 (128-aligned, lane-dense stores).
    run_case(k1, 2, 16, 16, 16)
    # Late-stage-like shape: C = 256 >> HW = 16 (masked lane stores, no transposes).
    run_case(k2, 2, 256, 4, 4)
    # Non-dividing batch: exercises pl.cdiv grid + masked ragged last block.
    run_case(k3, 9, 16, 8, 8)

    print("KERNEL_OK")
</pallas_src>

<mosaic_0001>
module attributes {stable_mosaic.version = 11 : i64} {
  func.func @kernel(%arg0: i32, %arg1: memref<3xf32, #tpu.memory_space<smem>>, %arg2: memref<1x16x256xf32, #tpu.memory_space<vmem>>, %arg3: memref<1x16x256xf32, #tpu.memory_space<vmem>>) attributes {dimension_semantics = [#tpu.dimension_semantics<parallel>], iteration_bounds = array<i64: 2>, scalar_prefetch = 0 : i64, scratch_operands = 0 : i64, tpu.core_type = #tpu.core_type<tc>, window_params = [{transform_indices = @transform_0, window_bounds = array<i64: 3>}, {transform_indices = @transform_1, window_bounds = array<i64: 1, 16, 256>}, {transform_indices = @transform_2, window_bounds = array<i64: 1, 16, 256>}]} {
    %c0 = arith.constant 0 : index
    %c0_0 = arith.constant 0 : index
    %c0_1 = arith.constant 0 : index
    %0 = vector.load %arg2[%c0, %c0_0, %c0_1] : memref<1x16x256xf32, #tpu.memory_space<vmem>>, vector<1x16x256xf32>
    %cst = arith.constant dense<0.000000e+00> : vector<1x16xf32>
    %1 = vector.multi_reduction <add>, %0, %cst [2] : vector<1x16x256xf32> to vector<1x16xf32>
    %2 = vector.shape_cast %1 : vector<1x16xf32> to vector<1x16x1xf32>
    %cst_2 = arith.constant 3.906250e-03 : f32
    %3 = vector.broadcast %cst_2 : f32 to vector<1x16x1xf32>
    %4 = arith.mulf %2, %3 : vector<1x16x1xf32>
    %cst_3 = arith.constant 0.000000e+00 : f32
    %5 = vector.broadcast %cst_3 : f32 to vector<1x1x1xf32>
    %6 = tpu.concatenate %5, %4, %5 in 1 : vector<1x1x1xf32>, vector<1x16x1xf32>, vector<1x1x1xf32> -> vector<1x18x1xf32>
    %cst_4 = arith.constant 0.000000e+00 : f32
    %7 = vector.broadcast %cst_4 : f32 to vector<1x16x1xf32>
    %c0_5 = arith.constant 0 : index
    %8 = memref.load %arg1[%c0_5] : memref<3xf32, #tpu.memory_space<smem>>
    %9 = vector.extract_strided_slice %6 {offsets = [0, 0, 0], sizes = [1, 16, 1], strides = [1, 1, 1]} : vector<1x18x1xf32> to vector<1x16x1xf32>
    %10 = vector.broadcast %8 : f32 to vector<1x16x1xf32>
    %11 = arith.mulf %10, %9 : vector<1x16x1xf32>
    %12 = arith.addf %7, %11 : vector<1x16x1xf32>
    %c1 = arith.constant 1 : index
    %13 = memref.load %arg1[%c1] : memref<3xf32, #tpu.memory_space<smem>>
    %14 = vector.extract_strided_slice %6 {offsets = [0, 1, 0], sizes = [1, 16, 1], strides = [1, 1, 1]} : vector<1x18x1xf32> to vector<1x16x1xf32>
    %15 = vector.broadcast %13 : f32 to vector<1x16x1xf32>
    %16 = arith.mulf %15, %14 : vector<1x16x1xf32>
    %17 = arith.addf %12, %16 : vector<1x16x1xf32>
    %c2 = arith.constant 2 : index
    %18 = memref.load %arg1[%c2] : memref<3xf32, #tpu.memory_space<smem>>
    %19 = vector.extract_strided_slice %6 {offsets = [0, 2, 0], sizes = [1, 16, 1], strides = [1, 1, 1]} : vector<1x18x1xf32> to vector<1x16x1xf32>
    %20 = vector.broadcast %18 : f32 to vector<1x16x1xf32>
    %21 = arith.mulf %20, %19 : vector<1x16x1xf32>
    %22 = arith.addf %17, %21 : vector<1x16x1xf32>
    %23 = arith.negf %22 : vector<1x16x1xf32>
    %24 = math.exp %23 : vector<1x16x1xf32>
    %cst_6 = arith.constant 1.000000e+00 : f32
    %25 = vector.broadcast %cst_6 : f32 to vector<1x16x1xf32>
    %26 = arith.addf %25, %24 : vector<1x16x1xf32>
    %27 = arith.divf %25, %26 : vector<1x16x1xf32>
    %c0_7 = arith.constant 0 : index
    %c0_8 = arith.constant 0 : index
    %c0_9 = arith.constant 0 : index
    %28 = vector.load %arg2[%c0_7, %c0_8, %c0_9] : memref<1x16x256xf32, #tpu.memory_space<vmem>>, vector<1x16x256xf32>
    %29 = vector.broadcast %27 : vector<1x16x1xf32> to vector<1x16x256xf32>
    %30 = arith.mulf %28, %29 : vector<1x16x256xf32>
    %c0_10 = arith.constant 0 : index
    %c0_11 = arith.constant 0 : index
    %c0_12 = arith.constant 0 : index
    %31 = vector.load %arg3[%c0_10, %c0_11, %c0_12] : memref<1x16x256xf32, #tpu.memory_space<vmem>>, vector<1x16x256xf32>
    tpu.vector_store %arg3[%c0_10, %c0_11, %c0_12], %30 {strides = array<i32>} : memref<1x16x256xf32, #tpu.memory_space<vmem>>, vector<1x16x256xf32>,
    return
  }
  func.func @transform_0(%arg0: i32) -> i32 {
    %c0_i32 = arith.constant 0 : i32
    %c0_i32_0 = arith.constant 0 : i32
    return %c0_i32 : i32
  }
  func.func @transform_1(%arg0: i32) -> (i32, i32, i32) {
    %c0_i32 = arith.constant 0 : i32
    %c0_i32_0 = arith.constant 0 : i32
    %c0_i32_1 = arith.constant 0 : i32
    return %arg0, %c0_i32, %c0_i32_0 : i32, i32, i32
  }
  func.func @transform_2(%arg0: i32) -> (i32, i32, i32) {
    %c0_i32 = arith.constant 0 : i32
    %c0_i32_0 = arith.constant 0 : i32
    %c0_i32_1 = arith.constant 0 : i32
    return %arg0, %c0_i32, %c0_i32_0 : i32, i32, i32
  }
}

</mosaic_0001>

<llo_original>
// kernel: tpu_custom_call.1
$region0: #{tpu_custom_call.1}
  #allocation0 [shape = 'u32[]', space=smem, size = 0x4, offset = 0x4, fixed_abs, tag = 'smem constant byte address 0x4 - core index']
  #allocation1 [shape = 'u32[72,128]{1,0:T(1,128)}', space=vmem, size = 0x9000, scoped, tag = 'internal scratch']
  %s0 = inlined_call_operand.hbm [shape: f32[3], index: 0, kind: input, shape index: {}]
  %s1 = inlined_call_operand.hbm [shape: f32[2,16,256], index: 1, kind: input, shape index: {}]
  %s2 = inlined_call_operand.hbm [shape: f32[2,16,256], index: 2, kind: output, shape index: {}]
  %s3 = sld [smem:[#allocation0]]
  $region49: #{tpu_custom_call.1} parent=0
    _
  %s5 = ssub.s32 1, %s3
  %s6 = scalar_select 0, %s5, %s3
  $region1: #{tpu_custom_call.1} parent=0
    #allocation2 [shape = 'u8[512]{0}', space=smem, size = 0x200, scoped, tag = 'input window, operand 0, single buffered']
    #allocation3 [shape = 's32[2]{0}', space=sflag, size = 0x8, scoped, tag = 'scoped memory for tpu_custom_call.1']
    #allocation4 [shape = 's32[2]{0}', space=sflag, size = 0x8, scoped, tag = 'scoped memory for tpu_custom_call.1']
    #allocation5 [shape = 's32[2]{0}', space=sflag, size = 0x8, scoped, tag = 'scoped memory for tpu_custom_call.1']
    #allocation6 [shape = 'u8[32768]{0}', space=vmem, size = 0x8000, scoped, tag = 'input window, operand 1']
    #allocation7 [shape = 'u8[32768]{0}', space=vmem, size = 0x8000, scoped, tag = 'output window, operand 0']
    %7 = vsyncpa [#allocation5], 0
    %8 = vsyncpa [#allocation3], 0
    %s9 = scalar_lea.sflag [#allocation3], 1
    %10 = vsyncpa %s9, 0
    %11 = vsyncpa [#allocation4], 0
    %s12 = scalar_lea.sflag [#allocation4], 1
    %13 = vsyncpa %s12, 0
    loop: start=0, step=1, limit=4
    $region2: #{tpu_custom_call.1} parent=1 // loop_pre_header
      _
    $region3: #{tpu_custom_call.1} parent=1 // loop_header
      %s15 = sphi 0, %s19
      %p16 = scmp.ge.s32.totalorder %s15, 4
      %s23 = sphi 0, %s23
      %s25 = sphi 0, %s23
      %s26 = sphi 0, %s25
      %s40 = sphi 0, %s26
      %s46 = sphi 0, %s48
      %s49 = sphi 0, %s46
      %s50 = sphi 0, %s49
      %s66 = sphi 0, %s50
      %s72 = sphi 0, %s74
      %s75 = sphi 0, %s72
      %s76 = sphi 0, %s75
      %s92 = sphi 0, %s76
    $region4: #{tpu_custom_call.1} parent=1 // loop_header_branch
      %18 = sbr.rel (%p16) target = $region8
    $region5: #{tpu_custom_call.1} parent=1 // loop_body
      %s20 = ssub.s32 %s15, 1
      %s21 = ssub.s32 %s15, 2
      %s22 = sadd.s32 %s15, 1
      %s24 = sadd.s32 %s23, 1
      %p27 = scmp.eq.s32.totalorder %s15, 1
      %p28 = scmp.ne.s32.totalorder %s23, %s25
      %p29 = scmp.eq.s32.totalorder %s15, 0
      %p30 = por %p28, %p29
      %p31 = scmp.ne.s32.totalorder %s23, %s25
      %p32 = scmp.eq.s32.totalorder %s20, 1
      %p33 = por %p31, %p32
      %p34 = scmp.ne.s32.totalorder %s25, %s26
      %p35 = scmp.eq.s32.totalorder %s20, 0
      %p36 = por %p34, %p35
      %p37 = scmp.ne.s32.totalorder %s25, %s26
      %p38 = scmp.eq.s32.totalorder %s21, 1
      %p39 = por %p37, %p38
      %p41 = scmp.ne.s32.totalorder %s26, %s40
      %p42 = scmp.eq.s32.totalorder %s21, 0
      %p43 = por %p41, %p42
      %s44 = ssub.s32 %s15, %s22
      %p45 = scmp.eq.s32.totalorder %s44, 0
      %s47 = sadd.s32 %s46, 1
      %s48 = scalar_select %p45, %s46, %s47
      %p51 = pneg %p45
      %p52 = scmp.eq.s32.totalorder %s15, 1
      %p53 = por %p51, %p52
      %p54 = scmp.ne.s32.totalorder %s46, %s49
      %p55 = scmp.eq.s32.totalorder %s15, 0
      %p56 = por %p54, %p55
      %p57 = scmp.ne.s32.totalorder %s46, %s49
      %p58 = scmp.eq.s32.totalorder %s20, 1
      %p59 = por %p57, %p58
      %p60 = scmp.ne.s32.totalorder %s49, %s50
      %p61 = scmp.eq.s32.totalorder %s20, 0
      %p62 = por %p60, %p61
      %p63 = scmp.ne.s32.totalorder %s49, %s50
      %p64 = scmp.eq.s32.totalorder %s21, 1
      %p65 = por %p63, %p64
      %p67 = scmp.ne.s32.totalorder %s50, %s66
      %p68 = scmp.eq.s32.totalorder %s21, 0
      %p69 = por %p67, %p68
      %s70 = ssub.s32 %s15, %s22
      %p71 = scmp.eq.s32.totalorder %s70, 0
      %s73 = sadd.s32 %s72, 1
      %s74 = scalar_select %p71, %s72, %s73
      %p77 = pneg %p71
      %p78 = scmp.eq.s32.totalorder %s15, 1
      %p79 = por %p77, %p78
      %p80 = scmp.ne.s32.totalorder %s72, %s75
      %p81 = scmp.eq.s32.totalorder %s15, 0
      %p82 = por %p80, %p81
      %p83 = scmp.ne.s32.totalorder %s72, %s75
      %p84 = scmp.eq.s32.totalorder %s20, 1
      %p85 = por %p83, %p84
      %p86 = scmp.ne.s32.totalorder %s75, %s76
      %p87 = scmp.eq.s32.totalorder %s20, 0
      %p88 = por %p86, %p87
      %p89 = scmp.ne.s32.totalorder %s75, %s76
      %p90 = scmp.eq.s32.totalorder %s21, 1
      %p91 = por %p89, %p90
      %p93 = scmp.ne.s32.totalorder %s76, %s92
      %p94 = scmp.eq.s32.totalorder %s21, 0
      %p95 = por %p93, %p94
      %p96 = scmp.le.s32.totalorder 1, %s15
      %p97 = scmp.lt.s32.totalorder %s15, 3
      %p98 = pnand %p96, %p97
      %p99 = pneg %p98
      // Predicated region
      $region9: #{tpu_custom_call.1} parent=5 // pred_check
        _
      $region10: #{tpu_custom_call.1} parent=5 // pred_check_branch
        %101 = sbr.rel (%p98) target = $region12
      $region11: #{tpu_custom_call.1} parent=5 // pred_region
        %s102 = ssub.s32 %s15, 1
        // Predicated region
        $region13: #{tpu_custom_call.1} parent=11 // pred_check
          %p103 = pneg %p36
        $region14: #{tpu_custom_call.1} parent=11 // pred_check_branch
          %105 = sbr.rel (%p103) target = $region16
        $region15: #{tpu_custom_call.1} parent=11 // pred_region
          %107 = vsyncadd [#allocation5], 0
          %s109 = sshll.u32 %s0, 4
          %s110 = int_to_ptr.hbm [resolvable:$true] %s109
          %112 = dma.hbm_to_smem %s110, 16, [#allocation2], [#allocation5]
        $region16: #{tpu_custom_call.1} parent=11 // pred_fallthru
          _
      $region12: #{tpu_custom_call.1} parent=5 // pred_fallthru
        _
      %p113 = scmp.lt.s32.totalorder %s15, 2
      // Predicated region
      $region17: #{tpu_custom_call.1} parent=5 // pred_check
        %p114 = pneg %p113
      $region18: #{tpu_custom_call.1} parent=5 // pred_check_branch
        %116 = sbr.rel (%p114) target = $region20
      $region19: #{tpu_custom_call.1} parent=5 // pred_region
        // Predicated region
        $region21: #{tpu_custom_call.1} parent=19 // pred_check
          %p117 = pneg %p56
        $region22: #{tpu_custom_call.1} parent=19 // pred_check_branch
          %119 = sbr.rel (%p117) target = $region24
        $region23: #{tpu_custom_call.1} parent=19 // pred_region
          %s120 = sand.u32 %s46, 1
          %s121 = scalar_lea.sflag [#allocation3], %s120
          %s122 = sand.u32 %s46, 1
          %s123 = smul.addr %s122, 32
          %s124 = scalar_lea.vmem [#allocation6], %s123
          %126 = vsyncadd %s121, 0
          %s127 = smul.addr %s15, 4
          %s128 = smul.addr %s127, 8
          %s129 = scalar_lea.hbm %s1, %s128
          %s130 = sshll.u32 %s129, 4
          %s131 = int_to_ptr.hbm [resolvable:$true] %s130
          %s132 = sshll.u32 %s124, 4
          %s133 = int_to_ptr.vmem [resolvable:$true] %s132
          %138 = dma.hbm_to_vmem [thread:$0]  %s131, 512, %s133, %s121, 256, 256, 16
        $region24: #{tpu_custom_call.1} parent=19 // pred_fallthru
          _
      $region20: #{tpu_custom_call.1} parent=5 // pred_fallthru
        _
      %p139 = scmp.le.s32.totalorder 1, %s15
      %p140 = scmp.lt.s32.totalorder %s15, 3
      %p141 = pnand %p139, %p140
      %p142 = pneg %p141
      // Predicated region
      $region25: #{tpu_custom_call.1} parent=5 // pred_check
        _
      $region26: #{tpu_custom_call.1} parent=5 // pred_check_branch
        %144 = sbr.rel (%p141) target = $region28
      $region27: #{tpu_custom_call.1} parent=5 // pred_region
        %s145 = ssub.s32 %s15, 1
        // Predicated region
        $region29: #{tpu_custom_call.1} parent=27 // pred_check
          %p146 = pneg %p36
        $region30: #{tpu_custom_call.1} parent=27 // pred_check_branch
          %148 = sbr.rel (%p146) target = $region32
        $region31: #{tpu_custom_call.1} parent=27 // pred_region
          %150 = dma.done [#allocation5], 16
        $region32: #{tpu_custom_call.1} parent=27 // pred_fallthru
          _
        %s151 = sand.u32 %s49, 1
        %s152 = scalar_lea.sflag [#allocation3], %s151
        %s153 = sand.u32 %s49, 1
        %s154 = smul.addr %s153, 32
        %s155 = scalar_lea.vmem [#allocation6], %s154
        // Predicated region
        $region33: #{tpu_custom_call.1} parent=27 // pred_check
          %p156 = pneg %p62
        $region34: #{tpu_custom_call.1} parent=27 // pred_check_branch
          %158 = sbr.rel (%p156) target = $region36
        $region35: #{tpu_custom_call.1} parent=27 // pred_region
          %160 = dma.done %s152, 512
        $region36: #{tpu_custom_call.1} parent=27 // pred_fallthru
          _
        %161 = sfence
        %p162 = pneg %p36
        %p163 = pneg %p33
        %s164 = sand.u32 %s49, 1
        %s165 = scalar_lea.sflag [#allocation3], %s164
        %s166 = sand.u32 %s49, 1
        %s167 = smul.addr %s166, 32
        %s168 = scalar_lea.vmem [#allocation6], %s167
        %p169 = pneg %p62
        %p170 = pneg %p59
        %p171 = pneg %p88
        %p172 = pneg %p85
        %s173 = sand.u32 %s75, 1
        %s174 = scalar_lea.sflag [#allocation4], %s173
        %s175 = sand.u32 %s75, 1
        %s176 = smul.addr %s175, 32
        %s177 = scalar_lea.vmem [#allocation7], %s176
        %v178 = vld [vmem:[%s155] sm:$0xff]
        %v179 = vld [vmem:[%s155 + $0x8] sm:$0xff]
        %v180 = vld [vmem:[%s155 + $0x10] sm:$0xff]
        %v181 = vld [vmem:[%s155 + $0x18] sm:$0xff]
        %v182 = vadd.f32 %v178, %v179
        %183 = vadd.xlane.f32.xlu0 %v182
        %v184 = vpop.xlane.xlu0 %183
        %v185 = vadd.f32 %v180, %v181
        %186 = vadd.xlane.f32.xlu0 %v185
        %v187 = vpop.xlane.xlu0 %186
        %v188 = vmul.f32 %v184, 0.00390625
        %v189 = vmul.f32 %v187, 0.00390625
        %vm192 = vcmask 1040384
        %v193 = vrot.slane %v188, 7
        %v194 = vrot.slane %v189, 7
        %v195 = vsel %vm192, %v193, %v194
        %v199 = vsel %vm192, 0.0, %v193
        %v200 = vsel %vm192, %v194, 0.0
        %s201 = sld [smem:[#allocation2]]
        %v202 = vstv %s201
        %v203 = vmul.f32 %v202, %v199
        %v204 = vmul.f32 %v202, %v195
        %v205 = vadd.f32 %v203, 0.0
        %v206 = vadd.f32 %v204, 0.0
        %s207 = sld [smem:[#allocation2 + $0x1]]
        %v208 = vstv %s207
        %v209 = vmul.f32 %v208, %v199
        %v210 = vmul.f32 %v208, %v195
        %v211 = vmul.f32 %v208, %v200
        %vm215 = vcmask 1046528
        %v216 = vrot.slane %v209, 1
        %v217 = vrot.slane %v210, 1
        %v218 = vsel %vm215, %v216, %v217
        %v219 = vrot.slane %v211, 1
        %v220 = vsel %vm215, %v217, %v219
        %v223 = vadd.f32 %v205, %v218
        %v224 = vadd.f32 %v206, %v220
        %s225 = sld [smem:[#allocation2 + $0x2]]
        %v226 = vstv %s225
        %v227 = vmul.f32 %v226, %v199
        %v228 = vmul.f32 %v226, %v195
        %v229 = vmul.f32 %v226, %v200
        %vm233 = vcmask 1045504
        %v234 = vrot.slane %v227, 2
        %v235 = vrot.slane %v228, 2
        %v236 = vsel %vm233, %v234, %v235
        %v237 = vrot.slane %v229, 2
        %v238 = vsel %vm233, %v235, %v237
        %v241 = vadd.f32 %v223, %v236
        %v242 = vadd.f32 %v224, %v238
        %v243 = vxor.u32 %v241, 2147483648
        %v244 = vxor.u32 %v242, 2147483648
        %v245 = vmul.f32 %v243, 1.442695
        %v246 = vpow.pop %v245
        %v247 = vmul.f32 %v244, 1.442695
        %v248 = vpow.pop %v247
        %v249 = vadd.f32 %v246, 1.0
        %v250 = vadd.f32 %v248, 1.0
        %v251 = vrcp.pop %v249
        %v252 = vmul.f32 %v249, %v251
        %v253 = vsub.f32 1.0, %v252
        %v254 = vmul.f32 %v251, %v253
        %v255 = vadd.f32 %v251, %v254
        %vm256 = vweird.f32 %v249
        %vm257 = vweird.f32 %v251
        %vm258 = vmor %vm256, %vm257
        %v259 = vsel %vm258, %v251, %v255
        %v260 = vand.u32 2147483647, %v249
        %vm261 = vcmp.eq.f32.partialorder %v260, 8.507059e+37
        %v262 = vand.u32 %v249, 2147483648
        %v263 = vor.u32 1.1754944e-38, %v262
        %v264 = vsel %vm261, %v263, %v259
        %v265 = vmul.f32 1.0, %v264
        %v266 = vrcp.pop %v250
        %v267 = vmul.f32 %v250, %v266
        %v268 = vsub.f32 1.0, %v267
        %v269 = vmul.f32 %v266, %v268
        %v270 = vadd.f32 %v266, %v269
        %vm271 = vweird.f32 %v250
        %vm272 = vweird.f32 %v266
        %vm273 = vmor %vm271, %vm272
        %v274 = vsel %vm273, %v266, %v270
        %v275 = vand.u32 2147483647, %v250
        %vm276 = vcmp.eq.f32.partialorder %v275, 8.507059e+37
        %v277 = vand.u32 %v250, 2147483648
        %v278 = vor.u32 1.1754944e-38, %v277
        %v279 = vsel %vm276, %v278, %v274
        %v280 = vmul.f32 1.0, %v279
        %282 = vset.pattern.permute.xlu0 0
        %283 = vperm.xlu0 %282, %v265
        %v284 = vpop.permute.xlu0 %283
        %287 = vset.pattern.permute.xlu0 0
        %288 = vperm.xlu0 %287, %v280
        %v289 = vpop.permute.xlu0 %288
        %v291 = vmul.f32 %v178, %v284
        %v292 = vmul.f32 %v179, %v284
        %v293 = vmul.f32 %v180, %v289
        %v294 = vmul.f32 %v181, %v289
        %295 = vst [vmem:[%s177] sm:$0xff] %v291
        %296 = vst [vmem:[%s177 + $0x8] sm:$0xff] %v292
        %297 = vst [vmem:[%s177 + $0x10] sm:$0xff] %v293
        %298 = vst [vmem:[%s177 + $0x18] sm:$0xff] %v294
        %s299 = sand.u32 %s75, 1
        %s300 = scalar_lea.sflag [#allocation4], %s299
        %s301 = sand.u32 %s75, 1
        %s302 = smul.addr %s301, 32
        %s303 = scalar_lea.vmem [#allocation7], %s302
        // Predicated region
        $region37: #{tpu_custom_call.1} parent=27 // pred_check
          %p304 = pneg %p85
        $region38: #{tpu_custom_call.1} parent=27 // pred_check_branch
          %306 = sbr.rel (%p304) target = $region40
        $region39: #{tpu_custom_call.1} parent=27 // pred_region
          %308 = vsyncadd %s300, 0
          %s309 = smul.addr %s20, 4
          %s310 = smul.addr %s309, 8
          %s311 = scalar_lea.hbm %s2, %s310
          %s312 = sshll.u32 %s303, 4
          %s313 = int_to_ptr.vmem [resolvable:$true] %s312
          %s314 = sshll.u32 %s311, 4
          %s315 = int_to_ptr.hbm [resolvable:$true] %s314
          %320 = dma.vmem_to_hbm [thread:$0]  %s313, 512, %s315, %s300, 256, 256, 16
        $region40: #{tpu_custom_call.1} parent=27 // pred_fallthru
          _
      $region28: #{tpu_custom_call.1} parent=5 // pred_fallthru
        _
      %p321 = scmp.le.s32.totalorder 2, %s15
      // Predicated region
      $region41: #{tpu_custom_call.1} parent=5 // pred_check
        %p322 = pneg %p321
      $region42: #{tpu_custom_call.1} parent=5 // pred_check_branch
        %324 = sbr.rel (%p322) target = $region44
      $region43: #{tpu_custom_call.1} parent=5 // pred_region
        %s325 = ssub.s32 %s15, 2
        // Predicated region
        $region45: #{tpu_custom_call.1} parent=43 // pred_check
          %p326 = pneg %p91
        $region46: #{tpu_custom_call.1} parent=43 // pred_check_branch
          %328 = sbr.rel (%p326) target = $region48
        $region47: #{tpu_custom_call.1} parent=43 // pred_region
          %s329 = sand.u32 %s76, 1
          %s330 = scalar_lea.sflag [#allocation4], %s329
          %s331 = sand.u32 %s76, 1
          %s332 = smul.addr %s331, 32
          %s333 = scalar_lea.vmem [#allocation7], %s332
          %335 = dma.done %s330, 512
        $region48: #{tpu_custom_call.1} parent=43 // pred_fallthru
          _
      $region44: #{tpu_custom_call.1} parent=5 // pred_fallthru
        _
    $region6: #{tpu_custom_call.1} parent=1 // loop_footer
      %s19 = sadd.s32 1, %s15
    $region7: #{tpu_custom_call.1} parent=1 // loop_footer_branch
      %14 = sbr.rel target = $region3
    $region8: #{tpu_custom_call.1} parent=1 // loop_exit
      _
    %336 = vsyncpa [#allocation3], 1
    %s337 = scalar_lea.sflag [#allocation3], 1
    %338 = vsyncpa %s337, 1
    %339 = vsyncpa [#allocation4], 1
    %s340 = scalar_lea.sflag [#allocation4], 1
    %341 = vsyncpa %s340, 1
    %342 = vsyncpa [#allocation5], 1
    %s343 = scalar_lea.sflag [#allocation5], 1
    %344 = vsyncpa %s343, 1

</llo_original>
